<compile_context>
chip_gen: v7x
topology: tpu7x:2x2x1
jax: 0.10.0
libtpu: 0.0.40
codegen_flags: <defaults>
</compile_context>

<pallas_src>
import functools
import math

import jax
import jax.numpy as jnp
from jax import lax
from jax.experimental import pallas as pl
from jax.experimental.pallas import tpu as pltpu


def _round_up(x, m):
    return (x + m - 1) // m * m


def _cdiv(a, b):
    return -(-a // b)


def _meta_contrastive_kernel(
    q_ref, k_ref, labq_ref, labk_ref, pcnt_ref,   # inputs
    out_ref,                                      # output: per-row mean_log_prob_pos
    l_ref, pdot_ref,                              # VMEM scratch (TQ,1) f32
    *, inv_temp, pad_k,
):
    ki = pl.program_id(1)

    # ---- init per query-row tile (first key step) ---------------------------
    @pl.when(ki == 0)
    def _init():
        l_ref[...] = jnp.zeros_like(l_ref)
        pdot_ref[...] = jnp.zeros_like(pdot_ref)

    # sim tile: contract dim 1 of both operands (no transpose materialized).
    # q_ref already carries the 1/temperature scale; both operands pre-normalized.
    s = lax.dot_general(
        q_ref[...], k_ref[...],
        dimension_numbers=(((1,), (1,)), ((), ())),
        preferred_element_type=jnp.float32,
    )                                                              # [TQ, TK]

    # ---- positive-pair numerator (before exp, so s can die afterwards) ------
    # Padded key columns carry a sentinel label -> never counted as positives.
    pdot_ref[...] += jnp.sum(
        jnp.where(labq_ref[...] == labk_ref[...], s, 0.0),
        axis=1, keepdims=True)

    # ---- softmax denominator with a compile-time constant max ---------------
    # Rows are L2-normalized in the wrapper, so s <= inv_temp: exp never
    # overflows; terms below f32 range are negligible vs the diagonal exp(0)=1.
    # TODO(synk): optional bf16 exp on v6e/v7x (2x EUP) once validated vs 1e-4 tol.
    l_ref[...] += jnp.sum(jnp.exp(s - inv_temp), axis=1, keepdims=True)

    # ---- finalize on the last key step ---------------------------------------
    @pl.when(ki == pl.num_programs(1) - 1)
    def _finalize():
        l = l_ref[...]
        if pad_k:
            # Padded key rows are zero vectors -> sim == 0 exactly; remove their
            # constant exp(0 - inv_temp) contribution from the denominator.
            l = l - float(pad_k) * math.exp(-inv_temp)
        log_z = inv_temp + jnp.log(l)                  # log sum_j exp(sim_ij)
        # Remove the self-pair analytically: diag(sim) = 1/temperature for
        # L2-normalized rows (exact up to f32 rounding).
        out_ref[...] = (pdot_ref[...] - inv_temp) / pcnt_ref[...] - log_z


def meta_contrastive_loss(features, labels, temperature=0.1, *,
                          block_q=256, block_k=512):
    """features: [N, D] float, labels: [N] int -> scalar f32 loss."""
    n, d = features.shape
    inv_temp = float(1.0 / temperature)

    f32 = features.astype(jnp.float32)
    labels = labels.astype(jnp.int32)

    # ---- hoisted normalization: one fused O(N*D) pass, 1/T folded into q ----
    ssq = jnp.sum(f32 * f32, axis=1, keepdims=True)
    # F.normalize(dim=1) with norm clamped at 1e-12  <=>  rsqrt(max(ssq, 1e-24))
    k_norm = f32 * lax.rsqrt(jnp.maximum(ssq, 1e-24))
    q_scaled = k_norm * inv_temp

    # ---- positive-pair counts per row (O(N log N), arbitrary int labels) ----
    sorted_lab = jnp.sort(labels)
    same_cnt = (jnp.searchsorted(sorted_lab, labels, side='right')
                - jnp.searchsorted(sorted_lab, labels, side='left'))
    pos_cnt = (same_cnt - 1).astype(jnp.float32)   # rows w/o positives -> 0 -> non-finite (as torch)

    # ---- tile selection -------------------------------------------------------
    assert block_q % 8 == 0 and block_k % 128 == 0
    n_q_tiles = _cdiv(n, block_q)
    if n_q_tiles == 1 and n >= 512:
        n_q_tiles = 2                       # keep grid[0] >= 2 for v7x dual-TC sharding
    tq = _round_up(_cdiv(n, n_q_tiles), 8)
    nq_pad = tq * n_q_tiles

    n_k_tiles = _cdiv(n, block_k)
    tk = _round_up(_cdiv(n, n_k_tiles), 128)
    nk_pad = tk * n_k_tiles

    pad_q = nq_pad - n
    pad_k = nk_pad - n

    if pad_q:
        q_scaled = jnp.pad(q_scaled, ((0, pad_q), (0, 0)))           # zero rows
        labels_q = jnp.pad(labels, (0, pad_q), constant_values=-1)
        pos_cnt = jnp.pad(pos_cnt, (0, pad_q), constant_values=1.0)  # avoid 0/0 in discarded rows
    else:
        labels_q = labels
    if pad_k:
        k_norm = jnp.pad(k_norm, ((0, pad_k), (0, 0)))               # zero rows -> sim == 0
        labels_k = jnp.pad(labels, (0, pad_k),
                           constant_values=jnp.iinfo(jnp.int32).min)  # never matches a real label
    else:
        labels_k = labels

    labels_q = labels_q.reshape(nq_pad, 1)
    labels_k = labels_k.reshape(1, nk_pad)
    pos_cnt = pos_cnt.reshape(nq_pad, 1)

    grid = (n_q_tiles, n_k_tiles)

    kernel = functools.partial(_meta_contrastive_kernel,
                               inv_temp=inv_temp, pad_k=pad_k)

    out = pl.pallas_call(
        kernel,
        out_shape=jax.ShapeDtypeStruct((nq_pad, 1), jnp.float32),
        grid_spec=pltpu.PrefetchScalarGridSpec(
            num_scalar_prefetch=0,
            grid=grid,
            in_specs=[
                pl.BlockSpec((tq, d), lambda qi, ki: (qi, 0)),   # scaled+normalized queries
                pl.BlockSpec((tk, d), lambda qi, ki: (ki, 0)),   # normalized keys
                pl.BlockSpec((tq, 1), lambda qi, ki: (qi, 0)),   # labels (column layout)
                pl.BlockSpec((1, tk), lambda qi, ki: (0, ki)),   # labels (row layout)
                pl.BlockSpec((tq, 1), lambda qi, ki: (qi, 0)),   # positive-pair counts
            ],
            out_specs=pl.BlockSpec((tq, 1), lambda qi, ki: (qi, 0)),
            scratch_shapes=[
                pltpu.VMEM((tq, 1), jnp.float32),   # running sum-exp
                pltpu.VMEM((tq, 1), jnp.float32),   # running positive dot-sum
            ],
        ),
        compiler_params=pltpu.CompilerParams(
            dimension_semantics=("parallel", "arbitrary"),
            vmem_limit_bytes=32 * 1024 * 1024,
        ),
        cost_estimate=pl.CostEstimate(
            flops=2 * nq_pad * nk_pad * d,
            transcendentals=nq_pad * nk_pad,
            bytes_accessed=4 * (nq_pad * d + n_q_tiles * nk_pad * d
                                + 4 * nq_pad + nk_pad),
        ),
    )(q_scaled, k_norm, labels_q, labels_k, pos_cnt)

    # Tiny O(N) reduction outside the kernel (keeps the q axis truly parallel).
    return -jnp.mean(out[:n, 0])


def _reference(features, labels, temperature=0.1):
    f32 = features.astype(jnp.float32)
    norm = jnp.sqrt(jnp.sum(f32 * f32, axis=1, keepdims=True))
    f = f32 / jnp.maximum(norm, 1e-12)
    sim = (f @ f.T) / temperature
    mask = (labels[:, None] == labels[None, :]).astype(jnp.float32)
    mask = mask - jnp.eye(labels.shape[0], dtype=jnp.float32)
    log_prob = sim - jnp.log(jnp.sum(jnp.exp(sim), axis=1, keepdims=True))
    mlpp = jnp.sum(mask * log_prob, axis=1) / jnp.sum(mask, axis=1)
    return -jnp.mean(mlpp)


if __name__ == "__main__":
    key = jax.random.PRNGKey(0)
    D = 32

    cases = [
        # (N, num_classes, temperature)
        (64, 4, 0.1),    # single tile, padded key columns (tk=128)
        (256, 8, 0.1),   # exact single-tile fit, no padding
        (601, 5, 0.5),   # grid (3, 2): multi key-tile accumulation + padded q and k
    ]
    for i, (N, C, temp) in enumerate(cases):
        feats = jax.random.normal(jax.random.fold_in(key, i), (N, D),
                                  dtype=jnp.float32)
        labels = jnp.arange(N, dtype=jnp.int32) % C
        loss = meta_contrastive_loss(feats, labels, temperature=temp)
        jax.block_until_ready(loss)
        ref = _reference(feats, labels, temperature=temp)
        assert jnp.allclose(loss, ref, rtol=1e-4, atol=1e-4), (N, loss, ref)

    print("KERNEL_OK")
</pallas_src>

<mosaic_0001>
module attributes {stable_mosaic.version = 11 : i64} {
  func.func @_meta_contrastive_kernel(%arg0: i32, %arg1: i32, %arg2: memref<64x32xf32, #tpu.memory_space<vmem>>, %arg3: memref<128x32xf32, #tpu.memory_space<vmem>>, %arg4: memref<64x1xi32, #tpu.memory_space<vmem>>, %arg5: memref<1x128xi32, #tpu.memory_space<vmem>>, %arg6: memref<64x1xf32, #tpu.memory_space<vmem>>, %arg7: memref<64x1xf32, #tpu.memory_space<vmem>>, %arg8: memref<64x1xf32, #tpu.memory_space<vmem>>, %arg9: memref<64x1xf32, #tpu.memory_space<vmem>>) attributes {dimension_semantics = [#tpu.dimension_semantics<parallel>, #tpu.dimension_semantics<arbitrary>], iteration_bounds = array<i64: 1, 1>, scalar_prefetch = 0 : i64, scratch_operands = 2 : i64, tpu.core_type = #tpu.core_type<tc>, window_params = [{transform_indices = @transform_0, window_bounds = array<i64: 64, 32>}, {transform_indices = @transform_1, window_bounds = array<i64: 128, 32>}, {transform_indices = @transform_2, window_bounds = array<i64: 64, 1>}, {transform_indices = @transform_3, window_bounds = array<i64: 1, 128>}, {transform_indices = @transform_4, window_bounds = array<i64: 64, 1>}, {transform_indices = @transform_5, window_bounds = array<i64: 64, 1>}]} {
    %c0_i32 = arith.constant 0 : i32
    %0 = arith.cmpi eq, %arg1, %c0_i32 : i32
    %1 = arith.extui %0 : i1 to i32
    %c0_i32_0 = arith.constant 0 : i32
    %2 = arith.cmpi ne, %1, %c0_i32_0 : i32
    scf.if %2 {
      %cst_22 = arith.constant 0.000000e+00 : f32
      %29 = vector.broadcast %cst_22 : f32 to vector<64x1xf32>
      %c0_23 = arith.constant 0 : index
      %c0_24 = arith.constant 0 : index
      %30 = vector.load %arg8[%c0_23, %c0_24] : memref<64x1xf32, #tpu.memory_space<vmem>>, vector<64x1xf32>
      tpu.vector_store %arg8[%c0_23, %c0_24], %29 {strides = array<i32>} : memref<64x1xf32, #tpu.memory_space<vmem>>, vector<64x1xf32>,
      %cst_25 = arith.constant 0.000000e+00 : f32
      %31 = vector.broadcast %cst_25 : f32 to vector<64x1xf32>
      %c0_26 = arith.constant 0 : index
      %c0_27 = arith.constant 0 : index
      %32 = vector.load %arg9[%c0_26, %c0_27] : memref<64x1xf32, #tpu.memory_space<vmem>>, vector<64x1xf32>
      tpu.vector_store %arg9[%c0_26, %c0_27], %31 {strides = array<i32>} : memref<64x1xf32, #tpu.memory_space<vmem>>, vector<64x1xf32>,
    } else {
    }
    %c0 = arith.constant 0 : index
    %c0_1 = arith.constant 0 : index
    %3 = vector.load %arg2[%c0, %c0_1] : memref<64x32xf32, #tpu.memory_space<vmem>>, vector<64x32xf32>
    %c0_2 = arith.constant 0 : index
    %c0_3 = arith.constant 0 : index
    %4 = vector.load %arg3[%c0_2, %c0_3] : memref<128x32xf32, #tpu.memory_space<vmem>>, vector<128x32xf32>
    %cst = arith.constant dense<0.000000e+00> : vector<64x128xf32>
    %5 = tpu.matmul %3, %4, %cst {dimension_numbers = #tpu.dot_dimension_numbers<[1], [1], [0], [0], [0, 0, 1, 0], [], []>} : vector<64x32xf32>, vector<128x32xf32>, vector<64x128xf32> -> vector<64x128xf32>
    %c0_4 = arith.constant 0 : index
    %c0_5 = arith.constant 0 : index
    %6 = vector.load %arg9[%c0_4, %c0_5] : memref<64x1xf32, #tpu.memory_space<vmem>>, vector<64x1xf32>
    %c0_6 = arith.constant 0 : index
    %c0_7 = arith.constant 0 : index
    %7 = vector.load %arg4[%c0_6, %c0_7] : memref<64x1xi32, #tpu.memory_space<vmem>>, vector<64x1xi32>
    %c0_8 = arith.constant 0 : index
    %c0_9 = arith.constant 0 : index
    %8 = vector.load %arg5[%c0_8, %c0_9] : memref<1x128xi32, #tpu.memory_space<vmem>>, vector<1x128xi32>
    %9 = vector.broadcast %7 : vector<64x1xi32> to vector<64x128xi32>
    %10 = vector.broadcast %8 : vector<1x128xi32> to vector<64x128xi32>
    %11 = arith.cmpi eq, %9, %10 : vector<64x128xi32>
    %cst_10 = arith.constant 0.000000e+00 : f32
    %12 = vector.broadcast %cst_10 : f32 to vector<64x128xf32>
    %13 = arith.select %11, %5, %12 : vector<64x128xi1>, vector<64x128xf32>
    %cst_11 = arith.constant dense<0.000000e+00> : vector<64xf32>
    %14 = vector.multi_reduction <add>, %13, %cst_11 [1] : vector<64x128xf32> to vector<64xf32>
    %15 = vector.shape_cast %14 : vector<64xf32> to vector<64x1xf32>
    %16 = arith.addf %6, %15 : vector<64x1xf32>
    %c0_12 = arith.constant 0 : index
    %c0_13 = arith.constant 0 : index
    %17 = vector.load %arg9[%c0_12, %c0_13] : memref<64x1xf32, #tpu.memory_space<vmem>>, vector<64x1xf32>
    tpu.vector_store %arg9[%c0_12, %c0_13], %16 {strides = array<i32>} : memref<64x1xf32, #tpu.memory_space<vmem>>, vector<64x1xf32>,
    %c0_14 = arith.constant 0 : index
    %c0_15 = arith.constant 0 : index
    %18 = vector.load %arg8[%c0_14, %c0_15] : memref<64x1xf32, #tpu.memory_space<vmem>>, vector<64x1xf32>
    %cst_16 = arith.constant 1.000000e+01 : f32
    %19 = vector.broadcast %cst_16 : f32 to vector<64x128xf32>
    %20 = arith.subf %5, %19 : vector<64x128xf32>
    %21 = math.exp %20 : vector<64x128xf32>
    %cst_17 = arith.constant dense<0.000000e+00> : vector<64xf32>
    %22 = vector.multi_reduction <add>, %21, %cst_17 [1] : vector<64x128xf32> to vector<64xf32>
    %23 = vector.shape_cast %22 : vector<64xf32> to vector<64x1xf32>
    %24 = arith.addf %18, %23 : vector<64x1xf32>
    %c0_18 = arith.constant 0 : index
    %c0_19 = arith.constant 0 : index
    %25 = vector.load %arg8[%c0_18, %c0_19] : memref<64x1xf32, #tpu.memory_space<vmem>>, vector<64x1xf32>
    tpu.vector_store %arg8[%c0_18, %c0_19], %24 {strides = array<i32>} : memref<64x1xf32, #tpu.memory_space<vmem>>, vector<64x1xf32>,
    %c0_i32_20 = arith.constant 0 : i32
    %26 = arith.cmpi eq, %arg1, %c0_i32_20 : i32
    %27 = arith.extui %26 : i1 to i32
    %c0_i32_21 = arith.constant 0 : i32
    %28 = arith.cmpi ne, %27, %c0_i32_21 : i32
    scf.if %28 {
      %c0_22 = arith.constant 0 : index
      %c0_23 = arith.constant 0 : index
      %29 = vector.load %arg8[%c0_22, %c0_23] : memref<64x1xf32, #tpu.memory_space<vmem>>, vector<64x1xf32>
      %cst_24 = arith.constant 0.00290559558 : f32
      %30 = vector.broadcast %cst_24 : f32 to vector<64x1xf32>
      %31 = arith.subf %29, %30 : vector<64x1xf32>
      %32 = math.log %31 : vector<64x1xf32>
      %cst_25 = arith.constant 1.000000e+01 : f32
      %33 = vector.broadcast %cst_25 : f32 to vector<64x1xf32>
      %34 = arith.addf %33, %32 : vector<64x1xf32>
      %c0_26 = arith.constant 0 : index
      %c0_27 = arith.constant 0 : index
      %35 = vector.load %arg9[%c0_26, %c0_27] : memref<64x1xf32, #tpu.memory_space<vmem>>, vector<64x1xf32>
      %cst_28 = arith.constant 1.000000e+01 : f32
      %36 = vector.broadcast %cst_28 : f32 to vector<64x1xf32>
      %37 = arith.subf %35, %36 : vector<64x1xf32>
      %c0_29 = arith.constant 0 : index
      %c0_30 = arith.constant 0 : index
      %38 = vector.load %arg6[%c0_29, %c0_30] : memref<64x1xf32, #tpu.memory_space<vmem>>, vector<64x1xf32>
      %39 = arith.divf %37, %38 : vector<64x1xf32>
      %40 = arith.subf %39, %34 : vector<64x1xf32>
      %c0_31 = arith.constant 0 : index
      %c0_32 = arith.constant 0 : index
      %41 = vector.load %arg7[%c0_31, %c0_32] : memref<64x1xf32, #tpu.memory_space<vmem>>, vector<64x1xf32>
      tpu.vector_store %arg7[%c0_31, %c0_32], %40 {strides = array<i32>} : memref<64x1xf32, #tpu.memory_space<vmem>>, vector<64x1xf32>,
    } else {
    }
    return
  }
  func.func @transform_0(%arg0: i32, %arg1: i32) -> (i32, i32) {
    %c0_i32 = arith.constant 0 : i32
    %c0_i32_0 = arith.constant 0 : i32
    return %arg0, %c0_i32 : i32, i32
  }
  func.func @transform_1(%arg0: i32, %arg1: i32) -> (i32, i32) {
    %c0_i32 = arith.constant 0 : i32
    %c0_i32_0 = arith.constant 0 : i32
    return %arg1, %c0_i32 : i32, i32
  }
  func.func @transform_2(%arg0: i32, %arg1: i32) -> (i32, i32) {
    %c0_i32 = arith.constant 0 : i32
    %c0_i32_0 = arith.constant 0 : i32
    return %arg0, %c0_i32 : i32, i32
  }
  func.func @transform_3(%arg0: i32, %arg1: i32) -> (i32, i32) {
    %c0_i32 = arith.constant 0 : i32
    %c0_i32_0 = arith.constant 0 : i32
    return %c0_i32, %arg1 : i32, i32
  }
  func.func @transform_4(%arg0: i32, %arg1: i32) -> (i32, i32) {
    %c0_i32 = arith.constant 0 : i32
    %c0_i32_0 = arith.constant 0 : i32
    return %arg0, %c0_i32 : i32, i32
  }
  func.func @transform_5(%arg0: i32, %arg1: i32) -> (i32, i32) {
    %c0_i32 = arith.constant 0 : i32
    %c0_i32_0 = arith.constant 0 : i32
    return %arg0, %c0_i32 : i32, i32
  }
}

</mosaic_0001>

<llo_original>
// kernel: tpu_custom_call.1
$region0: #{tpu_custom_call.1}
  #allocation0 [shape = 'u32[]', space=smem, size = 0x4, offset = 0x4, fixed_abs, tag = 'smem constant byte address 0x4 - core index']
  #allocation1 [shape = 'u32[144,128]{1,0:T(1,128)}', space=vmem, size = 0x12000, scoped, tag = 'internal scratch']
  #allocation2 [shape = 'f32[64,1]{1,0:T(8,128)}', space=vmem, size = 0x8000, scoped, tag = 'scratch operand']
  #allocation3 [shape = 'f32[64,1]{1,0:T(8,128)}', space=vmem, size = 0x8000, scoped, tag = 'scratch operand']
  %s0 = inlined_call_operand.vmem [shape: f32[64,32], index: 0, kind: input, shape index: {}]
  %s1 = inlined_call_operand.vmem [shape: f32[128,32], index: 1, kind: input, shape index: {}]
  %s2 = inlined_call_operand.vmem [shape: s32[64,1], index: 2, kind: input, shape index: {}]
  %s3 = inlined_call_operand.vmem [shape: s32[1,128], index: 3, kind: input, shape index: {}]
  %s4 = inlined_call_operand.vmem [shape: f32[64,1], index: 4, kind: input, shape index: {}]
  %s5 = inlined_call_operand.vmem [shape: f32[64,1], index: 5, kind: output, shape index: {}]
  %s6 = sld [smem:[#allocation0]]
  $region38: #{tpu_custom_call.1} parent=0
    _
  %s8 = ssub.s32 1, %s6
  %s9 = scalar_select 0, %s8, %s6
  // Predicated region
  $region2: #{tpu_custom_call.1} parent=0 // pred_check
    _
  $region3: #{tpu_custom_call.1} parent=0 // pred_check_branch
    %11 = sbr.rel (0) target = $region5
  $region4: #{tpu_custom_call.1} parent=0 // pred_region
    _
  $region5: #{tpu_custom_call.1} parent=0 // pred_fallthru
    _
  // Predicated region
  $region6: #{tpu_custom_call.1} parent=0 // pred_check
    _
  $region7: #{tpu_custom_call.1} parent=0 // pred_check_branch
    %13 = sbr.rel (0) target = $region9
  $region8: #{tpu_custom_call.1} parent=0 // pred_region
    _
  $region9: #{tpu_custom_call.1} parent=0 // pred_fallthru
    _
  // Predicated region
  $region10: #{tpu_custom_call.1} parent=0 // pred_check
    _
  $region11: #{tpu_custom_call.1} parent=0 // pred_check_branch
    %15 = sbr.rel (0) target = $region13
  $region12: #{tpu_custom_call.1} parent=0 // pred_region
    _
  $region13: #{tpu_custom_call.1} parent=0 // pred_fallthru
    _
  // Predicated region
  $region14: #{tpu_custom_call.1} parent=0 // pred_check
    _
  $region15: #{tpu_custom_call.1} parent=0 // pred_check_branch
    %17 = sbr.rel (0) target = $region17
  $region16: #{tpu_custom_call.1} parent=0 // pred_region
    _
  $region17: #{tpu_custom_call.1} parent=0 // pred_fallthru
    _
  // Predicated region
  $region18: #{tpu_custom_call.1} parent=0 // pred_check
    _
  $region19: #{tpu_custom_call.1} parent=0 // pred_check_branch
    %19 = sbr.rel (0) target = $region21
  $region20: #{tpu_custom_call.1} parent=0 // pred_region
    _
  $region21: #{tpu_custom_call.1} parent=0 // pred_fallthru
    _
  %p20 = scmp.eq.s32.totalorder 0, 0
  // Predicated region
  $region22: #{tpu_custom_call.1} parent=0 // pred_check
    %p21 = pneg %p20
  $region23: #{tpu_custom_call.1} parent=0 // pred_check_branch
    %23 = sbr.rel (%p21) target = $region25
  $region24: #{tpu_custom_call.1} parent=0 // pred_region
    %vm24 = vcmask 7168
    %25 = vst.msk [vmem:[#allocation2] sm:$0xff] %vm24, 0.0
    %26 = vst.msk [vmem:[#allocation2 + $0x8] sm:$0xff] %vm24, 0.0
    %27 = vst.msk [vmem:[#allocation2 + $0x10] sm:$0xff] %vm24, 0.0
    %28 = vst.msk [vmem:[#allocation2 + $0x18] sm:$0xff] %vm24, 0.0
    %29 = vst.msk [vmem:[#allocation2 + $0x20] sm:$0xff] %vm24, 0.0
    %30 = vst.msk [vmem:[#allocation2 + $0x28] sm:$0xff] %vm24, 0.0
    %31 = vst.msk [vmem:[#allocation2 + $0x30] sm:$0xff] %vm24, 0.0
    %32 = vst.msk [vmem:[#allocation2 + $0x38] sm:$0xff] %vm24, 0.0
    %33 = vst.msk [vmem:[#allocation3] sm:$0xff] %vm24, 0.0
    %34 = vst.msk [vmem:[#allocation3 + $0x8] sm:$0xff] %vm24, 0.0
    %35 = vst.msk [vmem:[#allocation3 + $0x10] sm:$0xff] %vm24, 0.0
    %36 = vst.msk [vmem:[#allocation3 + $0x18] sm:$0xff] %vm24, 0.0
    %37 = vst.msk [vmem:[#allocation3 + $0x20] sm:$0xff] %vm24, 0.0
    %38 = vst.msk [vmem:[#allocation3 + $0x28] sm:$0xff] %vm24, 0.0
    %39 = vst.msk [vmem:[#allocation3 + $0x30] sm:$0xff] %vm24, 0.0
    %40 = vst.msk [vmem:[#allocation3 + $0x38] sm:$0xff] %vm24, 0.0
  $region25: #{tpu_custom_call.1} parent=0 // pred_fallthru
    _
  %v41 = vld [vmem:[%s0] sm:$0xff]
  %v42 = vld [vmem:[%s0 + $0x8] sm:$0xff]
  %v43 = vld [vmem:[%s0 + $0x10] sm:$0xff]
  %v44 = vld [vmem:[%s0 + $0x18] sm:$0xff]
  %v45 = vld [vmem:[%s0 + $0x20] sm:$0xff]
  %v46 = vld [vmem:[%s0 + $0x28] sm:$0xff]
  %v47 = vld [vmem:[%s0 + $0x30] sm:$0xff]
  %v48 = vld [vmem:[%s0 + $0x38] sm:$0xff]
  %v49 = vld [vmem:[%s1] sm:$0xff]
  %v50 = vld [vmem:[%s1 + $0x8] sm:$0xff]
  %v51 = vld [vmem:[%s1 + $0x10] sm:$0xff]
  %v52 = vld [vmem:[%s1 + $0x18] sm:$0xff]
  %v53 = vld [vmem:[%s1 + $0x20] sm:$0xff]
  %v54 = vld [vmem:[%s1 + $0x28] sm:$0xff]
  %v55 = vld [vmem:[%s1 + $0x30] sm:$0xff]
  %v56 = vld [vmem:[%s1 + $0x38] sm:$0xff]
  %v57 = vld [vmem:[%s1 + $0x40] sm:$0xff]
  %v58 = vld [vmem:[%s1 + $0x48] sm:$0xff]
  %v59 = vld [vmem:[%s1 + $0x50] sm:$0xff]
  %v60 = vld [vmem:[%s1 + $0x58] sm:$0xff]
  %v61 = vld [vmem:[%s1 + $0x60] sm:$0xff]
  %v62 = vld [vmem:[%s1 + $0x68] sm:$0xff]
  %v63 = vld [vmem:[%s1 + $0x70] sm:$0xff]
  %v64 = vld [vmem:[%s1 + $0x78] sm:$0xff]
  %vm65 = vcmask 261120
  %v67 = vsel %vm65, %v41, 0
  %v70 = vsel %vm65, %v42, 0
  %v73 = vsel %vm65, %v43, 0
  %v76 = vsel %vm65, %v44, 0
  %v79 = vsel %vm65, %v45, 0
  %v82 = vsel %vm65, %v46, 0
  %v85 = vsel %vm65, %v47, 0
  %v88 = vsel %vm65, %v48, 0
  %v91 = vsel %vm65, %v49, 0
  %v94 = vsel %vm65, %v50, 0
  %v97 = vsel %vm65, %v51, 0
  %v100 = vsel %vm65, %v52, 0
  %v103 = vsel %vm65, %v53, 0
  %v106 = vsel %vm65, %v54, 0
  %v109 = vsel %vm65, %v55, 0
  %v112 = vsel %vm65, %v56, 0
  %v115 = vsel %vm65, %v57, 0
  %v118 = vsel %vm65, %v58, 0
  %v121 = vsel %vm65, %v59, 0
  %v124 = vsel %vm65, %v60, 0
  %v127 = vsel %vm65, %v61, 0
  %v130 = vsel %vm65, %v62, 0
  %v133 = vsel %vm65, %v63, 0
  %v136 = vsel %vm65, %v64, 0
  %138 = vmatprep.subr.mxu0 0.0
  %139 = vmatpush1.xpose.msra.mxu0 %v91
  %140 = vmatprep.subr.mxu0 0.0
  %141 = vmatpush1.xpose.msra.mxu0 %v94
  %142 = vmatprep.subr.mxu0 0.0
  %143 = vmatpush1.xpose.msra.mxu0 %v97
  %144 = vmatprep.subr.mxu0 0.0
  %145 = vmatpush1.xpose.msra.mxu0 %v100
  %146 = vmatprep.subr.mxu0 0.0
  %147 = vmatpush1.xpose.msra.mxu0 %v103
  %148 = vmatprep.subr.mxu0 0.0
  %149 = vmatpush1.xpose.msra.mxu0 %v106
  %150 = vmatprep.subr.mxu0 0.0
  %151 = vmatpush1.xpose.msra.mxu0 %v109
  %152 = vmatprep.subr.mxu0 0.0
  %153 = vmatpush1.xpose.msra.mxu0 %v112
  %154 = vmatprep.subr.mxu0 0.0
  %155 = vmatpush1.xpose.msra.mxu0 %v115
  %156 = vmatprep.subr.mxu0 0.0
  %157 = vmatpush1.xpose.msra.mxu0 %v118
  %158 = vmatprep.subr.mxu0 0.0
  %159 = vmatpush1.xpose.msra.mxu0 %v121
  %160 = vmatprep.subr.mxu0 0.0
  %161 = vmatpush1.xpose.msra.mxu0 %v124
  %162 = vmatprep.subr.mxu0 0.0
  %163 = vmatpush1.xpose.msra.mxu0 %v127
  %164 = vmatprep.subr.mxu0 0.0
  %165 = vmatpush1.xpose.msra.mxu0 %v130
  %166 = vmatprep.subr.mxu0 0.0
  %167 = vmatpush1.xpose.msra.mxu0 %v133
  %168 = vmatprep.subr.mxu0 0.0
  %169 = vmatpush1.xpose.msra.mxu0 %v136
  %170 = vmatprep.subr.mxu0 0.0
  %171 = vmatpush1.xpose.msra.mxu0 0.0
  %172 = vmatprep.subr.mxu0 0.0
  %173 = vmatpush1.xpose.msra.mxu0 0.0
  %174 = vmatprep.subr.mxu0 0.0
  %175 = vmatpush1.xpose.msra.mxu0 0.0
  %176 = vmatprep.subr.mxu0 0.0
  %177 = vmatpush1.xpose.msra.mxu0 0.0
  %178 = vmatprep.subr.mxu0 0.0
  %179 = vmatpush1.xpose.msra.mxu0 0.0
  %180 = vmatprep.subr.mxu0 0.0
  %181 = vmatpush1.xpose.msra.mxu0 0.0
  %182 = vmatprep.subr.mxu0 0.0
  %183 = vmatpush1.xpose.msra.mxu0 0.0
  %184 = vmatprep.subr.mxu0 0.0
  %185 = vmatpush1.xpose.msra.mxu0 0.0
  %186 = vmatprep.subr.mxu0 0.0
  %187 = vmatpush1.xpose.msra.mxu0 0.0
  %188 = vmatprep.subr.mxu0 0.0
  %189 = vmatpush1.xpose.msra.mxu0 0.0
  %190 = vmatprep.subr.mxu0 0.0
  %191 = vmatpush1.xpose.msra.mxu0 0.0
  %192 = vmatprep.subr.mxu0 0.0
  %193 = vmatpush1.xpose.msra.mxu0 0.0
  %194 = vmatprep.subr.mxu0 0.0
  %195 = vmatpush1.xpose.msra.mxu0 0.0
  %196 = vmatprep.subr.mxu0 0.0
  %197 = vmatpush1.xpose.msra.mxu0 0.0
  %198 = vmatprep.subr.mxu0 0.0
  %199 = vmatpush1.xpose.msra.mxu0 0.0
  %200 = vmatprep.subr.mxu0 0.0
  %201 = vmatpush1.xpose.msra.mxu0 0.0
  %202 = vmatprep.mubr.f32.mxu0 0.0
  %203 = vmatmul.mubr.f32.gmra.mrb[0].mxu0 %v67
  %v204 = vpop.f32.mrb[0].mxu0
  %v205 = vadd.f32 0.0, %v204
  %v206 = vpop.f32.mrb[0].mxu0
  %207 = vmatprep.mubr.f32.mxu0 0.0
  %208 = vmatmul.mubr.f32.gmra.mrb[0].mxu0 %v70
  %v209 = vpop.f32.mrb[0].mxu0
  %v210 = vadd.f32 0.0, %v209
  %v211 = vpop.f32.mrb[0].mxu0
  %212 = vmatprep.mubr.f32.mxu0 0.0
  %213 = vmatmul.mubr.f32.gmra.mrb[0].mxu0 %v73
  %v214 = vpop.f32.mrb[0].mxu0
  %v215 = vadd.f32 0.0, %v214
  %v216 = vpop.f32.mrb[0].mxu0
  %217 = vmatprep.mubr.f32.mxu0 0.0
  %218 = vmatmul.mubr.f32.gmra.mrb[0].mxu0 %v76
  %v219 = vpop.f32.mrb[0].mxu0
  %v220 = vadd.f32 0.0, %v219
  %v221 = vpop.f32.mrb[0].mxu0
  %222 = vmatprep.mubr.f32.mxu0 0.0
  %223 = vmatmul.mubr.f32.gmra.mrb[0].mxu0 %v79
  %v224 = vpop.f32.mrb[0].mxu0
  %v225 = vadd.f32 0.0, %v224
  %v226 = vpop.f32.mrb[0].mxu0
  %227 = vmatprep.mubr.f32.mxu0 0.0
  %228 = vmatmul.mubr.f32.gmra.mrb[0].mxu0 %v82
  %v229 = vpop.f32.mrb[0].mxu0
  %v230 = vadd.f32 0.0, %v229
  %v231 = vpop.f32.mrb[0].mxu0
  %232 = vmatprep.mubr.f32.mxu0 0.0
  %233 = vmatmul.mubr.f32.gmra.mrb[0].mxu0 %v85
  %v234 = vpop.f32.mrb[0].mxu0
  %v235 = vadd.f32 0.0, %v234
  %v236 = vpop.f32.mrb[0].mxu0
  %237 = vmatprep.mubr.f32.mxu0 0.0
  %238 = vmatmul.mubr.f32.gmra.mrb[0].mxu0 %v88
  %v239 = vpop.f32.mrb[0].mxu0
  %v240 = vadd.f32 0.0, %v239
  %v241 = vpop.f32.mrb[0].mxu0
  %242 = vdwg.mxu0
  %v243 = vld [vmem:[#allocation3] sm:$0xff]
  %v244 = vld [vmem:[#allocation3 + $0x8] sm:$0xff]
  %v245 = vld [vmem:[#allocation3 + $0x10] sm:$0xff]
  %v246 = vld [vmem:[#allocation3 + $0x18] sm:$0xff]
  %v247 = vld [vmem:[#allocation3 + $0x20] sm:$0xff]
  %v248 = vld [vmem:[#allocation3 + $0x28] sm:$0xff]
  %v249 = vld [vmem:[#allocation3 + $0x30] sm:$0xff]
  %v250 = vld [vmem:[#allocation3 + $0x38] sm:$0xff]
  %v251 = vld [vmem:[%s2] sm:$0xff]
  %v252 = vld [vmem:[%s2 + $0x8] sm:$0xff]
  %v253 = vld [vmem:[%s2 + $0x10] sm:$0xff]
  %v254 = vld [vmem:[%s2 + $0x18] sm:$0xff]
  %v255 = vld [vmem:[%s2 + $0x20] sm:$0xff]
  %v256 = vld [vmem:[%s2 + $0x28] sm:$0xff]
  %v257 = vld [vmem:[%s2 + $0x30] sm:$0xff]
  %v258 = vld [vmem:[%s2 + $0x38] sm:$0xff]
  %v259 = vld [vmem:[%s3] sm:$0x1]
  %260 = vset.pattern.permute.xlu0 0
  %261 = vperm.xlu0 %260, %v251
  %v262 = vpop.permute.xlu0 %261
  %263 = vset.pattern.permute.xlu0 0
  %264 = vperm.xlu0 %263, %v252
  %v265 = vpop.permute.xlu0 %264
  %266 = vset.pattern.permute.xlu0 0
  %267 = vperm.xlu0 %266, %v253
  %v268 = vpop.permute.xlu0 %267
  %269 = vset.pattern.permute.xlu0 0
  %270 = vperm.xlu0 %269, %v254
  %v271 = vpop.permute.xlu0 %270
  %272 = vset.pattern.permute.xlu0 0
  %273 = vperm.xlu0 %272, %v255
  %v274 = vpop.permute.xlu0 %273
  %275 = vset.pattern.permute.xlu0 0
  %276 = vperm.xlu0 %275, %v256
  %v277 = vpop.permute.xlu0 %276
  %278 = vset.pattern.permute.xlu0 0
  %279 = vperm.xlu0 %278, %v257
  %v280 = vpop.permute.xlu0 %279
  %281 = vset.pattern.permute.xlu0 0
  %282 = vperm.xlu0 %281, %v258
  %v283 = vpop.permute.xlu0 %282
  %v284 = vlaneseq
  %v285 = vshrl.u32 %v284, 7
  %v286 = vsub.s32 0, %v285
  %v287 = vrot.slane %v259, %v286
  %vm288 = vcmp.eq.s32.totalorder %v262, %v287
  %vm289 = vcmp.eq.s32.totalorder %v265, %v287
  %vm290 = vcmp.eq.s32.totalorder %v268, %v287
  %vm291 = vcmp.eq.s32.totalorder %v271, %v287
  %vm292 = vcmp.eq.s32.totalorder %v274, %v287
  %vm293 = vcmp.eq.s32.totalorder %v277, %v287
  %vm294 = vcmp.eq.s32.totalorder %v280, %v287
  %vm295 = vcmp.eq.s32.totalorder %v283, %v287
  %v296 = vsel %vm288, %v205, 0.0
  %v297 = vsel %vm289, %v210, 0.0
  %v298 = vsel %vm290, %v215, 0.0
  %v299 = vsel %vm291, %v220, 0.0
  %v300 = vsel %vm292, %v225, 0.0
  %v301 = vsel %vm293, %v230, 0.0
  %v302 = vsel %vm294, %v235, 0.0
  %v303 = vsel %vm295, %v240, 0.0
  %304 = vadd.xlane.f32.xlu0 %v296
  %v305 = vpop.xlane.xlu0 %304
  %306 = vadd.xlane.f32.xlu0 %v297
  %v307 = vpop.xlane.xlu0 %306
  %308 = vadd.xlane.f32.xlu0 %v298
  %v309 = vpop.xlane.xlu0 %308
  %310 = vadd.xlane.f32.xlu0 %v299
  %v311 = vpop.xlane.xlu0 %310
  %312 = vadd.xlane.f32.xlu0 %v300
  %v313 = vpop.xlane.xlu0 %312
  %314 = vadd.xlane.f32.xlu0 %v301
  %v315 = vpop.xlane.xlu0 %314
  %316 = vadd.xlane.f32.xlu0 %v302
  %v317 = vpop.xlane.xlu0 %316
  %318 = vadd.xlane.f32.xlu0 %v303
  %v319 = vpop.xlane.xlu0 %318
  %v320 = vadd.f32 %v243, %v305
  %v321 = vadd.f32 %v244, %v307
  %v322 = vadd.f32 %v245, %v309
  %v323 = vadd.f32 %v246, %v311
  %v324 = vadd.f32 %v247, %v313
  %v325 = vadd.f32 %v248, %v315
  %v326 = vadd.f32 %v249, %v317
  %v327 = vadd.f32 %v250, %v319
  %vm328 = vcmask 7168
  %329 = vst.msk [vmem:[#allocation3] sm:$0xff] %vm328, %v320
  %330 = vst.msk [vmem:[#allocation3 + $0x8] sm:$0xff] %vm328, %v321
  %331 = vst.msk [vmem:[#allocation3 + $0x10] sm:$0xff] %vm328, %v322
  %332 = vst.msk [vmem:[#allocation3 + $0x18] sm:$0xff] %vm328, %v323
  %333 = vst.msk [vmem:[#allocation3 + $0x20] sm:$0xff] %vm328, %v324
  %334 = vst.msk [vmem:[#allocation3 + $0x28] sm:$0xff] %vm328, %v325
  %335 = vst.msk [vmem:[#allocation3 + $0x30] sm:$0xff] %vm328, %v326
  %336 = vst.msk [vmem:[#allocation3 + $0x38] sm:$0xff] %vm328, %v327
  %v337 = vld [vmem:[#allocation2] sm:$0xff]
  %v338 = vld [vmem:[#allocation2 + $0x8] sm:$0xff]
  %v339 = vld [vmem:[#allocation2 + $0x10] sm:$0xff]
  %v340 = vld [vmem:[#allocation2 + $0x18] sm:$0xff]
  %v341 = vld [vmem:[#allocation2 + $0x20] sm:$0xff]
  %v342 = vld [vmem:[#allocation2 + $0x28] sm:$0xff]
  %v343 = vld [vmem:[#allocation2 + $0x30] sm:$0xff]
  %v344 = vld [vmem:[#allocation2 + $0x38] sm:$0xff]
  %v345 = vsub.f32 %v205, 10.0
  %v346 = vsub.f32 %v210, 10.0
  %v347 = vsub.f32 %v215, 10.0
  %v348 = vsub.f32 %v220, 10.0
  %v349 = vsub.f32 %v225, 10.0
  %v350 = vsub.f32 %v230, 10.0
  %v351 = vsub.f32 %v235, 10.0
  %v352 = vsub.f32 %v240, 10.0
  %v353 = vmul.f32 %v345, 1.442695
  %v354 = vpow.pop %v353
  %v355 = vmul.f32 %v346, 1.442695
  %v356 = vpow.pop %v355
  %v357 = vmul.f32 %v347, 1.442695
  %v358 = vpow.pop %v357
  %v359 = vmul.f32 %v348, 1.442695
  %v360 = vpow.pop %v359
  %v361 = vmul.f32 %v349, 1.442695
  %v362 = vpow.pop %v361
  %v363 = vmul.f32 %v350, 1.442695
  %v364 = vpow.pop %v363
  %v365 = vmul.f32 %v351, 1.442695
  %v366 = vpow.pop %v365
  %v367 = vmul.f32 %v352, 1.442695
  %v368 = vpow.pop %v367
  %369 = vadd.xlane.f32.xlu0 %v354
  %v370 = vpop.xlane.xlu0 %369
  %371 = vadd.xlane.f32.xlu0 %v356
  %v372 = vpop.xlane.xlu0 %371
  %373 = vadd.xlane.f32.xlu0 %v358
  %v374 = vpop.xlane.xlu0 %373
  %375 = vadd.xlane.f32.xlu0 %v360
  %v376 = vpop.xlane.xlu0 %375
  %377 = vadd.xlane.f32.xlu0 %v362
  %v378 = vpop.xlane.xlu0 %377
  %379 = vadd.xlane.f32.xlu0 %v364
  %v380 = vpop.xlane.xlu0 %379
  %381 = vadd.xlane.f32.xlu0 %v366
  %v382 = vpop.xlane.xlu0 %381
  %383 = vadd.xlane.f32.xlu0 %v368
  %v384 = vpop.xlane.xlu0 %383
  %v385 = vadd.f32 %v337, %v370
  %v386 = vadd.f32 %v338, %v372
  %v387 = vadd.f32 %v339, %v374
  %v388 = vadd.f32 %v340, %v376
  %v389 = vadd.f32 %v341, %v378
  %v390 = vadd.f32 %v342, %v380
  %v391 = vadd.f32 %v343, %v382
  %v392 = vadd.f32 %v344, %v384
  %393 = vst.msk [vmem:[#allocation2] sm:$0xff] %vm328, %v385
  %394 = vst.msk [vmem:[#allocation2 + $0x8] sm:$0xff] %vm328, %v386
  %395 = vst.msk [vmem:[#allocation2 + $0x10] sm:$0xff] %vm328, %v387
  %396 = vst.msk [vmem:[#allocation2 + $0x18] sm:$0xff] %vm328, %v388
  %397 = vst.msk [vmem:[#allocation2 + $0x20] sm:$0xff] %vm328, %v389
  %398 = vst.msk [vmem:[#allocation2 + $0x28] sm:$0xff] %vm328, %v390
  %399 = vst.msk [vmem:[#allocation2 + $0x30] sm:$0xff] %vm328, %v391
  %400 = vst.msk [vmem:[#allocation2 + $0x38] sm:$0xff] %vm328, %v392
  // Predicated region
  $region26: #{tpu_custom_call.1} parent=0 // pred_check
    %p401 = pneg %p20
  $region27: #{tpu_custom_call.1} parent=0 // pred_check_branch
    %403 = sbr.rel (%p401) target = $region29
  $region28: #{tpu_custom_call.1} parent=0 // pred_region
    %v404 = vld [vmem:[#allocation2] sm:$0xff]
    %v405 = vld [vmem:[#allocation2 + $0x8] sm:$0xff]
    %v406 = vld [vmem:[#allocation2 + $0x10] sm:$0xff]
    %v407 = vld [vmem:[#allocation2 + $0x18] sm:$0xff]
    %v408 = vld [vmem:[#allocation2 + $0x20] sm:$0xff]
    %v409 = vld [vmem:[#allocation2 + $0x28] sm:$0xff]
    %v410 = vld [vmem:[#allocation2 + $0x30] sm:$0xff]
    %v411 = vld [vmem:[#allocation2 + $0x38] sm:$0xff]
    %v412 = vsub.f32 %v404, 0.0029055956
    %v413 = vsub.f32 %v405, 0.0029055956
    %v414 = vsub.f32 %v406, 0.0029055956
    %v415 = vsub.f32 %v407, 0.0029055956
    %v416 = vsub.f32 %v408, 0.0029055956
    %v417 = vsub.f32 %v409, 0.0029055956
    %v418 = vsub.f32 %v410, 0.0029055956
    %v419 = vsub.f32 %v411, 0.0029055956
    %v420 = vlog2.pop %v412
    %v421 = vmul.f32 %v420, 0.6931472
    %v422 = vlog2.pop %v413
    %v423 = vmul.f32 %v422, 0.6931472
    %v424 = vlog2.pop %v414
    %v425 = vmul.f32 %v424, 0.6931472
    %v426 = vlog2.pop %v415
    %v427 = vmul.f32 %v426, 0.6931472
    %v428 = vlog2.pop %v416
    %v429 = vmul.f32 %v428, 0.6931472
    %v430 = vlog2.pop %v417
    %v431 = vmul.f32 %v430, 0.6931472
    %v432 = vlog2.pop %v418
    %v433 = vmul.f32 %v432, 0.6931472
    %v434 = vlog2.pop %v419
    %v435 = vmul.f32 %v434, 0.6931472
    %v436 = vadd.f32 %v421, 10.0
    %v437 = vadd.f32 %v423, 10.0
    %v438 = vadd.f32 %v425, 10.0
    %v439 = vadd.f32 %v427, 10.0
    %v440 = vadd.f32 %v429, 10.0
    %v441 = vadd.f32 %v431, 10.0
    %v442 = vadd.f32 %v433, 10.0
    %v443 = vadd.f32 %v435, 10.0
    %v444 = vld [vmem:[#allocation3] sm:$0xff]
    %v445 = vld [vmem:[#allocation3 + $0x8] sm:$0xff]
    %v446 = vld [vmem:[#allocation3 + $0x10] sm:$0xff]
    %v447 = vld [vmem:[#allocation3 + $0x18] sm:$0xff]
    %v448 = vld [vmem:[#allocation3 + $0x20] sm:$0xff]
    %v449 = vld [vmem:[#allocation3 + $0x28] sm:$0xff]
    %v450 = vld [vmem:[#allocation3 + $0x30] sm:$0xff]
    %v451 = vld [vmem:[#allocation3 + $0x38] sm:$0xff]
    %v452 = vsub.f32 %v444, 10.0
    %v453 = vsub.f32 %v445, 10.0
    %v454 = vsub.f32 %v446, 10.0
    %v455 = vsub.f32 %v447, 10.0
    %v456 = vsub.f32 %v448, 10.0
    %v457 = vsub.f32 %v449, 10.0
    %v458 = vsub.f32 %v450, 10.0
    %v459 = vsub.f32 %v451, 10.0
    %v460 = vld [vmem:[%s4] sm:$0xff]
    %v461 = vld [vmem:[%s4 + $0x8] sm:$0xff]
    %v462 = vld [vmem:[%s4 + $0x10] sm:$0xff]
    %v463 = vld [vmem:[%s4 + $0x18] sm:$0xff]
    %v464 = vld [vmem:[%s4 + $0x20] sm:$0xff]
    %v465 = vld [vmem:[%s4 + $0x28] sm:$0xff]
    %v466 = vld [vmem:[%s4 + $0x30] sm:$0xff]
    %v467 = vld [vmem:[%s4 + $0x38] sm:$0xff]
    %v468 = vrcp.pop %v460
    %v469 = vmul.f32 %v452, %v468
    %v470 = vrcp.pop %v461
    %v471 = vmul.f32 %v453, %v470
    %v472 = vrcp.pop %v462
    %v473 = vmul.f32 %v454, %v472
    %v474 = vrcp.pop %v463
    %v475 = vmul.f32 %v455, %v474
    %v476 = vrcp.pop %v464
    %v477 = vmul.f32 %v456, %v476
    %v478 = vrcp.pop %v465
    %v479 = vmul.f32 %v457, %v478
    %v480 = vrcp.pop %v466
    %v481 = vmul.f32 %v458, %v480
    %v482 = vrcp.pop %v467
    %v483 = vmul.f32 %v459, %v482
    %v484 = vsub.f32 %v469, %v436
    %v485 = vsub.f32 %v471, %v437
    %v486 = vsub.f32 %v473, %v438
    %v487 = vsub.f32 %v475, %v439
    %v488 = vsub.f32 %v477, %v440
    %v489 = vsub.f32 %v479, %v441
    %v490 = vsub.f32 %v481, %v442
    %v491 = vsub.f32 %v483, %v443
    %492 = vst.msk [vmem:[%s5] sm:$0xff] %vm328, %v484
    %493 = vst.msk [vmem:[%s5 + $0x8] sm:$0xff] %vm328, %v485
    %494 = vst.msk [vmem:[%s5 + $0x10] sm:$0xff] %vm328, %v486
    %495 = vst.msk [vmem:[%s5 + $0x18] sm:$0xff] %vm328, %v487
    %496 = vst.msk [vmem:[%s5 + $0x20] sm:$0xff] %vm328, %v488
    %497 = vst.msk [vmem:[%s5 + $0x28] sm:$0xff] %vm328, %v489
    %498 = vst.msk [vmem:[%s5 + $0x30] sm:$0xff] %vm328, %v490
    %499 = vst.msk [vmem:[%s5 + $0x38] sm:$0xff] %vm328, %v491
  $region29: #{tpu_custom_call.1} parent=0 // pred_fallthru
    _
  // Predicated region
  $region30: #{tpu_custom_call.1} parent=0 // pred_check
    _
  $region31: #{tpu_custom_call.1} parent=0 // pred_check_branch
    %501 = sbr.rel (0) target = $region33
  $region32: #{tpu_custom_call.1} parent=0 // pred_region
    _
  $region33: #{tpu_custom_call.1} parent=0 // pred_fallthru
    _
  // Predicated region
  $region34: #{tpu_custom_call.1} parent=0 // pred_check
    _
  $region35: #{tpu_custom_call.1} parent=0 // pred_check_branch
    %503 = sbr.rel (0) target = $region37
  $region36: #{tpu_custom_call.1} parent=0 // pred_region
    _
  $region37: #{tpu_custom_call.1} parent=0 // pred_fallthru
    _

</llo_original>
